<compile_context>
chip_gen: v7x
topology: tpu7x:2x2x1
jax: 0.10.0
libtpu: 0.0.40
codegen_flags: <defaults>
</compile_context>

<pallas_src>
import math

import jax
import jax.numpy as jnp
from jax.experimental import pallas as pl
from jax.experimental.pallas import tpu as pltpu


def _round_up(x, m):
    return ((x + m - 1) // m) * m


def _sublane_multiple(dtype):
    # 8 sublanes for 4-byte, 16 for 2-byte, 32 for 1-byte element types.
    itemsize = jnp.dtype(dtype).itemsize
    return max(8, 32 // max(itemsize, 1))


# ----------------------------------------------------------------------------
# Kernels
# ----------------------------------------------------------------------------
def _cplx_linear_kernel_f32(xr_ref, xi_ref, wr_ref, wi_ref, br_ref, bi_ref,
                            ore_ref, oim_ref):
    """f32 outputs: accumulate directly into the resident output blocks."""
    k = pl.program_id(2)

    @pl.when(k == 0)
    def _():
        ore_ref[...] = jnp.broadcast_to(br_ref[...], ore_ref.shape)
        oim_ref[...] = jnp.broadcast_to(bi_ref[...], oim_ref.shape)

    xr = xr_ref[...]
    xi = xi_ref[...]
    wr = wr_ref[...]
    wi = wi_ref[...]
    # y_re += xr@Wr^T - xi@Wi^T ; y_im += xr@Wi^T + xi@Wr^T
    ore_ref[...] += (jnp.dot(xr, wr, preferred_element_type=jnp.float32)
                     - jnp.dot(xi, wi, preferred_element_type=jnp.float32))
    oim_ref[...] += (jnp.dot(xr, wi, preferred_element_type=jnp.float32)
                     + jnp.dot(xi, wr, preferred_element_type=jnp.float32))


def _cplx_linear_kernel_acc(xr_ref, xi_ref, wr_ref, wi_ref, br_ref, bi_ref,
                            ore_ref, oim_ref, acc_re, acc_im):
    """Non-f32 outputs: f32 scratch accumulators, cast in the epilogue."""
    k = pl.program_id(2)

    @pl.when(k == 0)
    def _():
        acc_re[...] = jnp.broadcast_to(br_ref[...].astype(jnp.float32),
                                       acc_re.shape)
        acc_im[...] = jnp.broadcast_to(bi_ref[...].astype(jnp.float32),
                                       acc_im.shape)

    xr = xr_ref[...]
    xi = xi_ref[...]
    wr = wr_ref[...]
    wi = wi_ref[...]
    acc_re[...] += (jnp.dot(xr, wr, preferred_element_type=jnp.float32)
                    - jnp.dot(xi, wi, preferred_element_type=jnp.float32))
    acc_im[...] += (jnp.dot(xr, wi, preferred_element_type=jnp.float32)
                    + jnp.dot(xi, wr, preferred_element_type=jnp.float32))

    @pl.when(k == pl.num_programs(2) - 1)
    def _():
        ore_ref[...] = acc_re[...].astype(ore_ref.dtype)
        oim_ref[...] = acc_im[...].astype(oim_ref.dtype)


# ----------------------------------------------------------------------------
# Wrapper
# ----------------------------------------------------------------------------
def prepare_cplx_linear_params(w_re, w_im, b_re=None, b_im=None, *,
                               tn=512, tk=1024, compute_dtype=None):
    """One-time, per-weight-set preparation (hoist out of the forward path).

    Transposes W to (in, out), zero-pads weights/bias to tile multiples and
    fixes the N/K tile sizes.  Do this once when weights are created/updated;
    the per-call path then only touches activations.
    """
    out_features, in_features = w_re.shape
    dtype = jnp.dtype(compute_dtype) if compute_dtype is not None \
        else jnp.dtype(w_re.dtype)

    if b_re is None:
        b_re = jnp.zeros((out_features,), dtype)
    if b_im is None:
        b_im = jnp.zeros((out_features,), dtype)

    tn = min(tn, _round_up(out_features, 128))
    tk = min(tk, _round_up(in_features, 128))
    Kp = _round_up(in_features, tk)
    Np = _round_up(out_features, tn)

    wrT = jnp.asarray(w_re, dtype).T                       # (K, N)
    wiT = jnp.asarray(w_im, dtype).T
    if (Kp, Np) != (in_features, out_features):
        pad = ((0, Kp - in_features), (0, Np - out_features))
        wrT = jnp.pad(wrT, pad)
        wiT = jnp.pad(wiT, pad)

    br = jnp.asarray(b_re, dtype).reshape(1, out_features)
    bi = jnp.asarray(b_im, dtype).reshape(1, out_features)
    if Np != out_features:
        br = jnp.pad(br, ((0, 0), (0, Np - out_features)))
        bi = jnp.pad(bi, ((0, 0), (0, Np - out_features)))

    return dict(wrT=wrT, wiT=wiT, br=br, bi=bi,
                in_features=in_features, out_features=out_features,
                tn=tn, tk=tk, compute_dtype=dtype)


def cplx_linear_apply(params, x_re, x_im, *, tm=512, out_dtype=None):
    """Forward pass using prepared params.  Returns (y_re, y_im)."""
    in_features = params["in_features"]
    out_features = params["out_features"]
    tn, tk = params["tn"], params["tk"]
    cdtype = params["compute_dtype"]
    wrT, wiT, br, bi = params["wrT"], params["wiT"], params["br"], params["bi"]
    Kp, Np = wrT.shape

    lead_shape = x_re.shape[:-1]
    M = int(math.prod(lead_shape)) if lead_shape else 1
    out_dtype = jnp.dtype(out_dtype) if out_dtype is not None \
        else jnp.dtype(x_re.dtype)

    sub = _sublane_multiple(cdtype)
    tm = min(tm, _round_up(M, sub))
    Mp = _round_up(M, tm)

    xr = jnp.asarray(x_re, cdtype).reshape(M, in_features)
    xi = jnp.asarray(x_im, cdtype).reshape(M, in_features)
    if (Mp, Kp) != (M, in_features):
        pad = ((0, Mp - M), (0, Kp - in_features))
        xr = jnp.pad(xr, pad)   # K zero-pad is required for the reduction
        xi = jnp.pad(xi, pad)

    # Keep both TensorCores busy (v7x) when the M grid collapses to one block.
    if Mp // tm == 1:
        while Np // tn < 2 and tn > 128 and Np % (tn // 2) == 0:
            tn //= 2

    grid = (Mp // tm, Np // tn, Kp // tk)

    accumulate_in_out = out_dtype == jnp.dtype(jnp.float32)
    kernel = _cplx_linear_kernel_f32 if accumulate_in_out \
        else _cplx_linear_kernel_acc
    scratch = [] if accumulate_in_out \
        else [pltpu.VMEM((tm, tn), jnp.float32)] * 2

    # VMEM budget: double-buffered inputs + resident outputs + scratch.
    in_b = jnp.dtype(cdtype).itemsize
    out_b = out_dtype.itemsize
    working = (2 * tm * tk * in_b * 2       # x_re, x_im tiles (double-buffered)
               + 2 * tk * tn * in_b * 2     # W_re^T, W_im^T tiles
               + 2 * tn * in_b * 2          # bias blocks
               + 2 * tm * tn * out_b * 2    # output blocks
               + (0 if accumulate_in_out else 2 * tm * tn * 4))
    vmem_limit = int(min(max(int(working * 1.5), 32 << 20), 56 << 20))

    out_shape = (jax.ShapeDtypeStruct((Mp, Np), out_dtype),
                 jax.ShapeDtypeStruct((Mp, Np), out_dtype))

    y_re, y_im = pl.pallas_call(
        kernel,
        out_shape=out_shape,
        grid_spec=pltpu.PrefetchScalarGridSpec(
            num_scalar_prefetch=0,
            grid=grid,
            in_specs=[
                pl.BlockSpec((tm, tk), lambda i, j, k: (i, k)),   # x_re
                pl.BlockSpec((tm, tk), lambda i, j, k: (i, k)),   # x_im
                pl.BlockSpec((tk, tn), lambda i, j, k: (k, j)),   # W_re^T
                pl.BlockSpec((tk, tn), lambda i, j, k: (k, j)),   # W_im^T
                pl.BlockSpec((1, tn), lambda i, j, k: (0, j)),    # b_re
                pl.BlockSpec((1, tn), lambda i, j, k: (0, j)),    # b_im
            ],
            out_specs=[
                pl.BlockSpec((tm, tn), lambda i, j, k: (i, j)),   # y_re
                pl.BlockSpec((tm, tn), lambda i, j, k: (i, j)),   # y_im
            ],
            scratch_shapes=scratch,
        ),
        compiler_params=pltpu.CompilerParams(
            dimension_semantics=("parallel", "parallel", "arbitrary"),
            vmem_limit_bytes=vmem_limit),
    )(xr, xi, wrT, wiT, br, bi)

    if (Mp, Np) != (M, out_features):
        y_re = y_re[:M, :out_features]
        y_im = y_im[:M, :out_features]
    y_re = y_re.reshape(*lead_shape, out_features)
    y_im = y_im.reshape(*lead_shape, out_features)
    return y_re, y_im


def cplx_linear(x_re, x_im, w_re, w_im, b_re=None, b_im=None, *,
                tm=512, tn=512, tk=1024, compute_dtype=None, out_dtype=None):
    """One-shot convenience wrapper (prepare + apply).  Prefer preparing once
    with prepare_cplx_linear_params() when weights are reused across calls."""
    params = prepare_cplx_linear_params(w_re, w_im, b_re, b_im,
                                        tn=tn, tk=tk,
                                        compute_dtype=compute_dtype)
    return cplx_linear_apply(params, x_re, x_im, tm=tm, out_dtype=out_dtype)


def init_cplx_linear_params(key, in_features, out_features, dtype=jnp.float32):
    """Deterministic synthetic init, matching the scale of
    cplx_kaiming_uniform_ / cplx_uniform_independent_ (uniform +/- 1/sqrt(fan_in))."""
    # TODO(synk): exact cplx_kaiming_uniform_ (Rayleigh magnitude + uniform
    # phase) not reproduced; scale-equivalent uniform init used instead.
    k1, k2, k3, k4 = jax.random.split(key, 4)
    bound = 1.0 / math.sqrt(in_features)
    w_re = jax.random.uniform(k1, (out_features, in_features), dtype,
                              minval=-bound, maxval=bound)
    w_im = jax.random.uniform(k2, (out_features, in_features), dtype,
                              minval=-bound, maxval=bound)
    b_re = jax.random.uniform(k3, (out_features,), dtype,
                              minval=-bound, maxval=bound)
    b_im = jax.random.uniform(k4, (out_features,), dtype,
                              minval=-bound, maxval=bound)
    return w_re, w_im, b_re, b_im


if __name__ == "__main__":
    key = jax.random.PRNGKey(0)
    kx1, kx2, kp = jax.random.split(key, 3)

    batch, seq, in_features, out_features = 2, 8, 32, 32

    x_re = jax.random.normal(kx1, (batch, seq, in_features), jnp.float32)
    x_im = jax.random.normal(kx2, (batch, seq, in_features), jnp.float32)

    w_re, w_im, b_re, b_im = init_cplx_linear_params(
        kp, in_features, out_features)

    # Weight prep hoisted out of the forward path (done once per weight set).
    params = prepare_cplx_linear_params(w_re, w_im, b_re, b_im)

    y_re, y_im = cplx_linear_apply(params, x_re, x_im)
    jax.block_until_ready((y_re, y_im))

    # Reference check in plain JAX.
    ref_re = x_re @ w_re.T - x_im @ w_im.T + b_re
    ref_im = x_re @ w_im.T + x_im @ w_re.T + b_im
    assert y_re.shape == ref_re.shape and y_im.shape == ref_im.shape
    assert jnp.allclose(y_re, ref_re, atol=1e-4, rtol=1e-4), "real part mismatch"
    assert jnp.allclose(y_im, ref_im, atol=1e-4, rtol=1e-4), "imag part mismatch"

    print("KERNEL_OK")
</pallas_src>

<mosaic_0001>
module attributes {stable_mosaic.version = 11 : i64} {
  func.func @_cplx_linear_kernel_f32(%arg0: i32, %arg1: i32, %arg2: i32, %arg3: memref<16x128xf32, #tpu.memory_space<vmem>>, %arg4: memref<16x128xf32, #tpu.memory_space<vmem>>, %arg5: memref<128x128xf32, #tpu.memory_space<vmem>>, %arg6: memref<128x128xf32, #tpu.memory_space<vmem>>, %arg7: memref<1x128xf32, #tpu.memory_space<vmem>>, %arg8: memref<1x128xf32, #tpu.memory_space<vmem>>, %arg9: memref<16x128xf32, #tpu.memory_space<vmem>>, %arg10: memref<16x128xf32, #tpu.memory_space<vmem>>) attributes {dimension_semantics = [#tpu.dimension_semantics<parallel>, #tpu.dimension_semantics<parallel>, #tpu.dimension_semantics<arbitrary>], iteration_bounds = array<i64: 1, 1, 1>, scalar_prefetch = 0 : i64, scratch_operands = 0 : i64, tpu.core_type = #tpu.core_type<tc>, window_params = [{transform_indices = @transform_0, window_bounds = array<i64: 16, 128>}, {transform_indices = @transform_1, window_bounds = array<i64: 16, 128>}, {transform_indices = @transform_2, window_bounds = array<i64: 128, 128>}, {transform_indices = @transform_3, window_bounds = array<i64: 128, 128>}, {transform_indices = @transform_4, window_bounds = array<i64: 1, 128>}, {transform_indices = @transform_5, window_bounds = array<i64: 1, 128>}, {transform_indices = @transform_6, window_bounds = array<i64: 16, 128>}, {transform_indices = @transform_7, window_bounds = array<i64: 16, 128>}]} {
    %c0_i32 = arith.constant 0 : i32
    %0 = arith.cmpi eq, %arg2, %c0_i32 : i32
    %1 = arith.extui %0 : i1 to i32
    %c0_i32_0 = arith.constant 0 : i32
    %2 = arith.cmpi ne, %1, %c0_i32_0 : i32
    scf.if %2 {
      %c0_19 = arith.constant 0 : index
      %c0_20 = arith.constant 0 : index
      %19 = vector.load %arg7[%c0_19, %c0_20] : memref<1x128xf32, #tpu.memory_space<vmem>>, vector<1x128xf32>
      %20 = vector.shape_cast %19 : vector<1x128xf32> to vector<1x128xf32>
      %21 = vector.broadcast %20 : vector<1x128xf32> to vector<16x128xf32>
      %c0_21 = arith.constant 0 : index
      %c0_22 = arith.constant 0 : index
      %22 = vector.load %arg9[%c0_21, %c0_22] : memref<16x128xf32, #tpu.memory_space<vmem>>, vector<16x128xf32>
      tpu.vector_store %arg9[%c0_21, %c0_22], %21 {strides = array<i32>} : memref<16x128xf32, #tpu.memory_space<vmem>>, vector<16x128xf32>,
      %c0_23 = arith.constant 0 : index
      %c0_24 = arith.constant 0 : index
      %23 = vector.load %arg8[%c0_23, %c0_24] : memref<1x128xf32, #tpu.memory_space<vmem>>, vector<1x128xf32>
      %24 = vector.shape_cast %23 : vector<1x128xf32> to vector<1x128xf32>
      %25 = vector.broadcast %24 : vector<1x128xf32> to vector<16x128xf32>
      %c0_25 = arith.constant 0 : index
      %c0_26 = arith.constant 0 : index
      %26 = vector.load %arg10[%c0_25, %c0_26] : memref<16x128xf32, #tpu.memory_space<vmem>>, vector<16x128xf32>
      tpu.vector_store %arg10[%c0_25, %c0_26], %25 {strides = array<i32>} : memref<16x128xf32, #tpu.memory_space<vmem>>, vector<16x128xf32>,
    } else {
    }
    %c0 = arith.constant 0 : index
    %c0_1 = arith.constant 0 : index
    %3 = vector.load %arg3[%c0, %c0_1] : memref<16x128xf32, #tpu.memory_space<vmem>>, vector<16x128xf32>
    %c0_2 = arith.constant 0 : index
    %c0_3 = arith.constant 0 : index
    %4 = vector.load %arg4[%c0_2, %c0_3] : memref<16x128xf32, #tpu.memory_space<vmem>>, vector<16x128xf32>
    %c0_4 = arith.constant 0 : index
    %c0_5 = arith.constant 0 : index
    %5 = vector.load %arg5[%c0_4, %c0_5] : memref<128x128xf32, #tpu.memory_space<vmem>>, vector<128x128xf32>
    %c0_6 = arith.constant 0 : index
    %c0_7 = arith.constant 0 : index
    %6 = vector.load %arg6[%c0_6, %c0_7] : memref<128x128xf32, #tpu.memory_space<vmem>>, vector<128x128xf32>
    %c0_8 = arith.constant 0 : index
    %c0_9 = arith.constant 0 : index
    %7 = vector.load %arg9[%c0_8, %c0_9] : memref<16x128xf32, #tpu.memory_space<vmem>>, vector<16x128xf32>
    %cst = arith.constant dense<0.000000e+00> : vector<16x128xf32>
    %8 = tpu.matmul %3, %5, %cst {dimension_numbers = #tpu.dot_dimension_numbers<[1], [0], [0], [1], [0, 0, 1, 1], [], []>} : vector<16x128xf32>, vector<128x128xf32>, vector<16x128xf32> -> vector<16x128xf32>
    %cst_10 = arith.constant dense<0.000000e+00> : vector<16x128xf32>
    %9 = tpu.matmul %4, %6, %cst_10 {dimension_numbers = #tpu.dot_dimension_numbers<[1], [0], [0], [1], [0, 0, 1, 1], [], []>} : vector<16x128xf32>, vector<128x128xf32>, vector<16x128xf32> -> vector<16x128xf32>
    %10 = arith.subf %8, %9 : vector<16x128xf32>
    %11 = arith.addf %7, %10 : vector<16x128xf32>
    %c0_11 = arith.constant 0 : index
    %c0_12 = arith.constant 0 : index
    %12 = vector.load %arg9[%c0_11, %c0_12] : memref<16x128xf32, #tpu.memory_space<vmem>>, vector<16x128xf32>
    tpu.vector_store %arg9[%c0_11, %c0_12], %11 {strides = array<i32>} : memref<16x128xf32, #tpu.memory_space<vmem>>, vector<16x128xf32>,
    %c0_13 = arith.constant 0 : index
    %c0_14 = arith.constant 0 : index
    %13 = vector.load %arg10[%c0_13, %c0_14] : memref<16x128xf32, #tpu.memory_space<vmem>>, vector<16x128xf32>
    %cst_15 = arith.constant dense<0.000000e+00> : vector<16x128xf32>
    %14 = tpu.matmul %3, %6, %cst_15 {dimension_numbers = #tpu.dot_dimension_numbers<[1], [0], [0], [1], [0, 0, 1, 1], [], []>} : vector<16x128xf32>, vector<128x128xf32>, vector<16x128xf32> -> vector<16x128xf32>
    %cst_16 = arith.constant dense<0.000000e+00> : vector<16x128xf32>
    %15 = tpu.matmul %4, %5, %cst_16 {dimension_numbers = #tpu.dot_dimension_numbers<[1], [0], [0], [1], [0, 0, 1, 1], [], []>} : vector<16x128xf32>, vector<128x128xf32>, vector<16x128xf32> -> vector<16x128xf32>
    %16 = arith.addf %14, %15 : vector<16x128xf32>
    %17 = arith.addf %13, %16 : vector<16x128xf32>
    %c0_17 = arith.constant 0 : index
    %c0_18 = arith.constant 0 : index
    %18 = vector.load %arg10[%c0_17, %c0_18] : memref<16x128xf32, #tpu.memory_space<vmem>>, vector<16x128xf32>
    tpu.vector_store %arg10[%c0_17, %c0_18], %17 {strides = array<i32>} : memref<16x128xf32, #tpu.memory_space<vmem>>, vector<16x128xf32>,
    return
  }
  func.func @transform_0(%arg0: i32, %arg1: i32, %arg2: i32) -> (i32, i32) {
    %c0_i32 = arith.constant 0 : i32
    return %arg0, %arg2 : i32, i32
  }
  func.func @transform_1(%arg0: i32, %arg1: i32, %arg2: i32) -> (i32, i32) {
    %c0_i32 = arith.constant 0 : i32
    return %arg0, %arg2 : i32, i32
  }
  func.func @transform_2(%arg0: i32, %arg1: i32, %arg2: i32) -> (i32, i32) {
    %c0_i32 = arith.constant 0 : i32
    return %arg2, %arg1 : i32, i32
  }
  func.func @transform_3(%arg0: i32, %arg1: i32, %arg2: i32) -> (i32, i32) {
    %c0_i32 = arith.constant 0 : i32
    return %arg2, %arg1 : i32, i32
  }
  func.func @transform_4(%arg0: i32, %arg1: i32, %arg2: i32) -> (i32, i32) {
    %c0_i32 = arith.constant 0 : i32
    %c0_i32_0 = arith.constant 0 : i32
    return %c0_i32, %arg1 : i32, i32
  }
  func.func @transform_5(%arg0: i32, %arg1: i32, %arg2: i32) -> (i32, i32) {
    %c0_i32 = arith.constant 0 : i32
    %c0_i32_0 = arith.constant 0 : i32
    return %c0_i32, %arg1 : i32, i32
  }
  func.func @transform_6(%arg0: i32, %arg1: i32, %arg2: i32) -> (i32, i32) {
    %c0_i32 = arith.constant 0 : i32
    return %arg0, %arg1 : i32, i32
  }
  func.func @transform_7(%arg0: i32, %arg1: i32, %arg2: i32) -> (i32, i32) {
    %c0_i32 = arith.constant 0 : i32
    return %arg0, %arg1 : i32, i32
  }
}

</mosaic_0001>

<llo_original>
// kernel: tpu_custom_call.1
$region0: #{tpu_custom_call.1}
  #allocation0 [shape = 'u32[]', space=smem, size = 0x4, offset = 0x4, fixed_abs, tag = 'smem constant byte address 0x4 - core index']
  #allocation1 [shape = 'u32[144,128]{1,0:T(1,128)}', space=vmem, size = 0x12000, scoped, tag = 'internal scratch']
  %s0 = inlined_call_operand.hbm [shape: f32[16,128], index: 0, kind: input, shape index: {}]
  %s1 = inlined_call_operand.hbm [shape: f32[16,128], index: 1, kind: input, shape index: {}]
  %s2 = inlined_call_operand.hbm [shape: f32[128,128], index: 2, kind: input, shape index: {}]
  %s3 = inlined_call_operand.hbm [shape: f32[128,128], index: 3, kind: input, shape index: {}]
  %s4 = inlined_call_operand.vmem [shape: f32[1,128], index: 4, kind: input, shape index: {}]
  %s5 = inlined_call_operand.vmem [shape: f32[1,128], index: 5, kind: input, shape index: {}]
  %s6 = inlined_call_operand.hbm [shape: f32[16,128], index: 6, kind: output, shape index: {0}]
  %s7 = inlined_call_operand.hbm [shape: f32[16,128], index: 7, kind: output, shape index: {1}]
  %8 = xla_tuple %s6, %s7
  %s9 = sld [smem:[#allocation0]]
  $region62: #{tpu_custom_call.1} parent=0
    _
  %s11 = ssub.s32 1, %s9
  %s12 = scalar_select 0, %s11, %s9
  $region1: #{tpu_custom_call.1} parent=0
    #allocation2 [shape = 'u8[8192]{0}', space=vmem, size = 0x2000, scoped, tag = 'input window, operand 0, single buffered']
    #allocation3 [shape = 's32[1]{0}', space=sflag, size = 0x4, scoped, tag = 'scoped memory for tpu_custom_call.1']
    #allocation4 [shape = 's32[1]{0}', space=sflag, size = 0x4, scoped, tag = 'scoped memory for tpu_custom_call.1']
    #allocation5 [shape = 'u8[8192]{0}', space=vmem, size = 0x2000, scoped, tag = 'input window, operand 1, single buffered']
    #allocation6 [shape = 's32[1]{0}', space=sflag, size = 0x4, scoped, tag = 'scoped memory for tpu_custom_call.1']
    #allocation7 [shape = 'u8[65536]{0}', space=vmem, size = 0x10000, scoped, tag = 'input window, operand 2, single buffered']
    #allocation8 [shape = 'u8[65536]{0}', space=vmem, size = 0x10000, scoped, tag = 'input window, operand 3, single buffered']
    #allocation9 [shape = 's32[1]{0}', space=sflag, size = 0x4, scoped, tag = 'scoped memory for tpu_custom_call.1']
    #allocation10 [shape = 'u8[8192]{0}', space=vmem, size = 0x2000, scoped, tag = 'output window, operand 0, single buffered']
    #allocation11 [shape = 'u8[8192]{0}', space=vmem, size = 0x2000, scoped, tag = 'output window, operand 1, single buffered']
    #allocation12 [shape = 's32[1]{0}', space=sflag, size = 0x4, scoped, tag = 'scoped memory for tpu_custom_call.1']
    %13 = vsyncpa [#allocation3], 0
    %14 = vsyncpa [#allocation6], 0
    %15 = vsyncpa [#allocation9], 0
    %16 = vsyncpa [#allocation4], 0
    %17 = vsyncpa [#allocation12], 0
    // Predicated region
    $region2: #{tpu_custom_call.1} parent=1 // pred_check
      _
    $region3: #{tpu_custom_call.1} parent=1 // pred_check_branch
      %19 = sbr.rel (0) target = $region5
    $region4: #{tpu_custom_call.1} parent=1 // pred_region
      %s21 = ssub.s32 256, 256
      %22 = vsyncadd [#allocation3], %s21
      %s23 = sshll.u32 [#allocation2], 4
      %s24 = int_to_ptr.vmem [resolvable:$true] %s23
      %29 = dma.hbm_to_vmem [thread:$0]  %s0, 256, %s24, [#allocation3], 128, 128, 8
    $region5: #{tpu_custom_call.1} parent=1 // pred_fallthru
      _
    // Predicated region
    $region6: #{tpu_custom_call.1} parent=1 // pred_check
      _
    $region7: #{tpu_custom_call.1} parent=1 // pred_check_branch
      %31 = sbr.rel (0) target = $region9
    $region8: #{tpu_custom_call.1} parent=1 // pred_region
      %s33 = ssub.s32 256, 256
      %34 = vsyncadd [#allocation6], %s33
      %s35 = sshll.u32 [#allocation5], 4
      %s36 = int_to_ptr.vmem [resolvable:$true] %s35
      %41 = dma.hbm_to_vmem [thread:$0]  %s1, 256, %s36, [#allocation6], 128, 128, 8
    $region9: #{tpu_custom_call.1} parent=1 // pred_fallthru
      _
    // Predicated region
    $region10: #{tpu_custom_call.1} parent=1 // pred_check
      _
    $region11: #{tpu_custom_call.1} parent=1 // pred_check_branch
      %43 = sbr.rel (0) target = $region13
    $region12: #{tpu_custom_call.1} parent=1 // pred_region
      %s45 = ssub.s32 2048, 2048
      %46 = vsyncadd [#allocation6], %s45
      %s47 = sshll.u32 [#allocation7], 4
      %s48 = int_to_ptr.vmem [resolvable:$true] %s47
      %53 = dma.hbm_to_vmem [thread:$0]  %s2, 2048, %s48, [#allocation6], 128, 128, 8
    $region13: #{tpu_custom_call.1} parent=1 // pred_fallthru
      _
    // Predicated region
    $region14: #{tpu_custom_call.1} parent=1 // pred_check
      _
    $region15: #{tpu_custom_call.1} parent=1 // pred_check_branch
      %55 = sbr.rel (0) target = $region17
    $region16: #{tpu_custom_call.1} parent=1 // pred_region
      %s57 = ssub.s32 2048, 2048
      %58 = vsyncadd [#allocation9], %s57
      %s59 = sshll.u32 [#allocation8], 4
      %s60 = int_to_ptr.vmem [resolvable:$true] %s59
      %65 = dma.hbm_to_vmem [thread:$0]  %s3, 2048, %s60, [#allocation9], 128, 128, 8
    $region17: #{tpu_custom_call.1} parent=1 // pred_fallthru
      _
    // Predicated region
    $region18: #{tpu_custom_call.1} parent=1 // pred_check
      _
    $region19: #{tpu_custom_call.1} parent=1 // pred_check_branch
      %67 = sbr.rel (0) target = $region21
    $region20: #{tpu_custom_call.1} parent=1 // pred_region
      _
    $region21: #{tpu_custom_call.1} parent=1 // pred_fallthru
      _
    // Predicated region
    $region22: #{tpu_custom_call.1} parent=1 // pred_check
      _
    $region23: #{tpu_custom_call.1} parent=1 // pred_check_branch
      %69 = sbr.rel (0) target = $region25
    $region24: #{tpu_custom_call.1} parent=1 // pred_region
      _
    $region25: #{tpu_custom_call.1} parent=1 // pred_fallthru
      _
    // Predicated region
    $region26: #{tpu_custom_call.1} parent=1 // pred_check
      _
    $region27: #{tpu_custom_call.1} parent=1 // pred_check_branch
      %71 = sbr.rel (0) target = $region29
    $region28: #{tpu_custom_call.1} parent=1 // pred_region
      %72 = dma.done [#allocation3], 256
    $region29: #{tpu_custom_call.1} parent=1 // pred_fallthru
      _
    // Predicated region
    $region30: #{tpu_custom_call.1} parent=1 // pred_check
      _
    $region31: #{tpu_custom_call.1} parent=1 // pred_check_branch
      %74 = sbr.rel (0) target = $region33
    $region32: #{tpu_custom_call.1} parent=1 // pred_region
      %75 = dma.done [#allocation6], 256
    $region33: #{tpu_custom_call.1} parent=1 // pred_fallthru
      _
    // Predicated region
    $region34: #{tpu_custom_call.1} parent=1 // pred_check
      _
    $region35: #{tpu_custom_call.1} parent=1 // pred_check_branch
      %77 = sbr.rel (0) target = $region37
    $region36: #{tpu_custom_call.1} parent=1 // pred_region
      %78 = dma.done [#allocation6], 2048
    $region37: #{tpu_custom_call.1} parent=1 // pred_fallthru
      _
    // Predicated region
    $region38: #{tpu_custom_call.1} parent=1 // pred_check
      _
    $region39: #{tpu_custom_call.1} parent=1 // pred_check_branch
      %80 = sbr.rel (0) target = $region41
    $region40: #{tpu_custom_call.1} parent=1 // pred_region
      %81 = dma.done [#allocation9], 2048
    $region41: #{tpu_custom_call.1} parent=1 // pred_fallthru
      _
    %p82 = scmp.eq.s32.totalorder 0, 0
    // Predicated region
    $region42: #{tpu_custom_call.1} parent=1 // pred_check
      %p83 = pneg %p82
    $region43: #{tpu_custom_call.1} parent=1 // pred_check_branch
      %85 = sbr.rel (%p83) target = $region45
    $region44: #{tpu_custom_call.1} parent=1 // pred_region
      %v86 = vld [vmem:[%s4] sm:$0x1]
      %v88 = vlaneseq
      %v89 = vshrl.u32 %v88, 7
      %v90 = vsub.s32 0, %v89
      %v91 = vrot.slane %v86, %v90
      %93 = vst [vmem:[#allocation10] sm:$0xff] %v91
      %94 = vst [vmem:[#allocation10 + $0x8] sm:$0xff] %v91
      %v95 = vld [vmem:[%s5] sm:$0x1]
      %v97 = vlaneseq
      %v98 = vshrl.u32 %v97, 7
      %v99 = vsub.s32 0, %v98
      %v100 = vrot.slane %v95, %v99
      %102 = vst [vmem:[#allocation11] sm:$0xff] %v100
      %103 = vst [vmem:[#allocation11 + $0x8] sm:$0xff] %v100
    $region45: #{tpu_custom_call.1} parent=1 // pred_fallthru
      _
    %v104 = vld [vmem:[#allocation2] sm:$0xff]
    %v105 = vld [vmem:[#allocation2 + $0x8] sm:$0xff]
    %v106 = vld [vmem:[#allocation5] sm:$0xff]
    %v107 = vld [vmem:[#allocation5 + $0x8] sm:$0xff]
    %v108 = vld [vmem:[#allocation7] sm:$0xff]
    %v109 = vld [vmem:[#allocation7 + $0x8] sm:$0xff]
    %v110 = vld [vmem:[#allocation7 + $0x10] sm:$0xff]
    %v111 = vld [vmem:[#allocation7 + $0x18] sm:$0xff]
    %v112 = vld [vmem:[#allocation7 + $0x20] sm:$0xff]
    %v113 = vld [vmem:[#allocation7 + $0x28] sm:$0xff]
    %v114 = vld [vmem:[#allocation7 + $0x30] sm:$0xff]
    %v115 = vld [vmem:[#allocation7 + $0x38] sm:$0xff]
    %v116 = vld [vmem:[#allocation7 + $0x40] sm:$0xff]
    %v117 = vld [vmem:[#allocation7 + $0x48] sm:$0xff]
    %v118 = vld [vmem:[#allocation7 + $0x50] sm:$0xff]
    %v119 = vld [vmem:[#allocation7 + $0x58] sm:$0xff]
    %v120 = vld [vmem:[#allocation7 + $0x60] sm:$0xff]
    %v121 = vld [vmem:[#allocation7 + $0x68] sm:$0xff]
    %v122 = vld [vmem:[#allocation7 + $0x70] sm:$0xff]
    %v123 = vld [vmem:[#allocation7 + $0x78] sm:$0xff]
    %v124 = vld [vmem:[#allocation8] sm:$0xff]
    %v125 = vld [vmem:[#allocation8 + $0x8] sm:$0xff]
    %v126 = vld [vmem:[#allocation8 + $0x10] sm:$0xff]
    %v127 = vld [vmem:[#allocation8 + $0x18] sm:$0xff]
    %v128 = vld [vmem:[#allocation8 + $0x20] sm:$0xff]
    %v129 = vld [vmem:[#allocation8 + $0x28] sm:$0xff]
    %v130 = vld [vmem:[#allocation8 + $0x30] sm:$0xff]
    %v131 = vld [vmem:[#allocation8 + $0x38] sm:$0xff]
    %v132 = vld [vmem:[#allocation8 + $0x40] sm:$0xff]
    %v133 = vld [vmem:[#allocation8 + $0x48] sm:$0xff]
    %v134 = vld [vmem:[#allocation8 + $0x50] sm:$0xff]
    %v135 = vld [vmem:[#allocation8 + $0x58] sm:$0xff]
    %v136 = vld [vmem:[#allocation8 + $0x60] sm:$0xff]
    %v137 = vld [vmem:[#allocation8 + $0x68] sm:$0xff]
    %v138 = vld [vmem:[#allocation8 + $0x70] sm:$0xff]
    %v139 = vld [vmem:[#allocation8 + $0x78] sm:$0xff]
    %v140 = vld [vmem:[#allocation10] sm:$0xff]
    %v141 = vld [vmem:[#allocation10 + $0x8] sm:$0xff]
    %142 = vmatprep.subr.mxu0 0.0
    %143 = vmatpush1.msra.mxu0 %v108
    %144 = vmatprep.subr.mxu0 0.0
    %145 = vmatpush1.msra.mxu0 %v109
    %146 = vmatprep.subr.mxu0 0.0
    %147 = vmatpush1.msra.mxu0 %v110
    %148 = vmatprep.subr.mxu0 0.0
    %149 = vmatpush1.msra.mxu0 %v111
    %150 = vmatprep.subr.mxu0 0.0
    %151 = vmatpush1.msra.mxu0 %v112
    %152 = vmatprep.subr.mxu0 0.0
    %153 = vmatpush1.msra.mxu0 %v113
    %154 = vmatprep.subr.mxu0 0.0
    %155 = vmatpush1.msra.mxu0 %v114
    %156 = vmatprep.subr.mxu0 0.0
    %157 = vmatpush1.msra.mxu0 %v115
    %158 = vmatprep.subr.mxu0 0.0
    %159 = vmatpush1.msra.mxu0 %v116
    %160 = vmatprep.subr.mxu0 0.0
    %161 = vmatpush1.msra.mxu0 %v117
    %162 = vmatprep.subr.mxu0 0.0
    %163 = vmatpush1.msra.mxu0 %v118
    %164 = vmatprep.subr.mxu0 0.0
    %165 = vmatpush1.msra.mxu0 %v119
    %166 = vmatprep.subr.mxu0 0.0
    %167 = vmatpush1.msra.mxu0 %v120
    %168 = vmatprep.subr.mxu0 0.0
    %169 = vmatpush1.msra.mxu0 %v121
    %170 = vmatprep.subr.mxu0 0.0
    %171 = vmatpush1.msra.mxu0 %v122
    %172 = vmatprep.subr.mxu0 0.0
    %173 = vmatpush1.msra.mxu0 %v123
    %174 = vmatprep.subr.mxu0 0.0
    %175 = vmatpush1.msra.mxu0 0.0
    %176 = vmatprep.subr.mxu0 0.0
    %177 = vmatpush1.msra.mxu0 0.0
    %178 = vmatprep.subr.mxu0 0.0
    %179 = vmatpush1.msra.mxu0 0.0
    %180 = vmatprep.subr.mxu0 0.0
    %181 = vmatpush1.msra.mxu0 0.0
    %182 = vmatprep.subr.mxu0 0.0
    %183 = vmatpush1.msra.mxu0 0.0
    %184 = vmatprep.subr.mxu0 0.0
    %185 = vmatpush1.msra.mxu0 0.0
    %186 = vmatprep.subr.mxu0 0.0
    %187 = vmatpush1.msra.mxu0 0.0
    %188 = vmatprep.subr.mxu0 0.0
    %189 = vmatpush1.msra.mxu0 0.0
    %190 = vmatprep.subr.mxu0 0.0
    %191 = vmatpush1.msra.mxu0 0.0
    %192 = vmatprep.subr.mxu0 0.0
    %193 = vmatpush1.msra.mxu0 0.0
    %194 = vmatprep.subr.mxu0 0.0
    %195 = vmatpush1.msra.mxu0 0.0
    %196 = vmatprep.subr.mxu0 0.0
    %197 = vmatpush1.msra.mxu0 0.0
    %198 = vmatprep.subr.mxu0 0.0
    %199 = vmatpush1.msra.mxu0 0.0
    %200 = vmatprep.subr.mxu0 0.0
    %201 = vmatpush1.msra.mxu0 0.0
    %202 = vmatprep.subr.mxu0 0.0
    %203 = vmatpush1.msra.mxu0 0.0
    %204 = vmatprep.subr.mxu0 0.0
    %205 = vmatpush1.msra.mxu0 0.0
    %206 = vmatprep.mubr.f32.mxu0 0.0
    %207 = vmatmul.mubr.f32.gmra.mrb[0].mxu0 %v104
    %v208 = vpop.f32.mrb[0].mxu0
    %v209 = vadd.f32 0.0, %v208
    %v210 = vpop.f32.mrb[0].mxu0
    %211 = vmatprep.mubr.f32.mxu0 0.0
    %212 = vmatmul.mubr.f32.gmra.mrb[0].mxu0 %v105
    %v213 = vpop.f32.mrb[0].mxu0
    %v214 = vadd.f32 0.0, %v213
    %v215 = vpop.f32.mrb[0].mxu0
    %216 = vdwg.mxu0
    %217 = vmatprep.subr.mxu0 0.0
    %218 = vmatpush1.msra.mxu0 %v124
    %219 = vmatprep.subr.mxu0 0.0
    %220 = vmatpush1.msra.mxu0 %v125
    %221 = vmatprep.subr.mxu0 0.0
    %222 = vmatpush1.msra.mxu0 %v126
    %223 = vmatprep.subr.mxu0 0.0
    %224 = vmatpush1.msra.mxu0 %v127
    %225 = vmatprep.subr.mxu0 0.0
    %226 = vmatpush1.msra.mxu0 %v128
    %227 = vmatprep.subr.mxu0 0.0
    %228 = vmatpush1.msra.mxu0 %v129
    %229 = vmatprep.subr.mxu0 0.0
    %230 = vmatpush1.msra.mxu0 %v130
    %231 = vmatprep.subr.mxu0 0.0
    %232 = vmatpush1.msra.mxu0 %v131
    %233 = vmatprep.subr.mxu0 0.0
    %234 = vmatpush1.msra.mxu0 %v132
    %235 = vmatprep.subr.mxu0 0.0
    %236 = vmatpush1.msra.mxu0 %v133
    %237 = vmatprep.subr.mxu0 0.0
    %238 = vmatpush1.msra.mxu0 %v134
    %239 = vmatprep.subr.mxu0 0.0
    %240 = vmatpush1.msra.mxu0 %v135
    %241 = vmatprep.subr.mxu0 0.0
    %242 = vmatpush1.msra.mxu0 %v136
    %243 = vmatprep.subr.mxu0 0.0
    %244 = vmatpush1.msra.mxu0 %v137
    %245 = vmatprep.subr.mxu0 0.0
    %246 = vmatpush1.msra.mxu0 %v138
    %247 = vmatprep.subr.mxu0 0.0
    %248 = vmatpush1.msra.mxu0 %v139
    %249 = vmatprep.subr.mxu0 0.0
    %250 = vmatpush1.msra.mxu0 0.0
    %251 = vmatprep.subr.mxu0 0.0
    %252 = vmatpush1.msra.mxu0 0.0
    %253 = vmatprep.subr.mxu0 0.0
    %254 = vmatpush1.msra.mxu0 0.0
    %255 = vmatprep.subr.mxu0 0.0
    %256 = vmatpush1.msra.mxu0 0.0
    %257 = vmatprep.subr.mxu0 0.0
    %258 = vmatpush1.msra.mxu0 0.0
    %259 = vmatprep.subr.mxu0 0.0
    %260 = vmatpush1.msra.mxu0 0.0
    %261 = vmatprep.subr.mxu0 0.0
    %262 = vmatpush1.msra.mxu0 0.0
    %263 = vmatprep.subr.mxu0 0.0
    %264 = vmatpush1.msra.mxu0 0.0
    %265 = vmatprep.subr.mxu0 0.0
    %266 = vmatpush1.msra.mxu0 0.0
    %267 = vmatprep.subr.mxu0 0.0
    %268 = vmatpush1.msra.mxu0 0.0
    %269 = vmatprep.subr.mxu0 0.0
    %270 = vmatpush1.msra.mxu0 0.0
    %271 = vmatprep.subr.mxu0 0.0
    %272 = vmatpush1.msra.mxu0 0.0
    %273 = vmatprep.subr.mxu0 0.0
    %274 = vmatpush1.msra.mxu0 0.0
    %275 = vmatprep.subr.mxu0 0.0
    %276 = vmatpush1.msra.mxu0 0.0
    %277 = vmatprep.subr.mxu0 0.0
    %278 = vmatpush1.msra.mxu0 0.0
    %279 = vmatprep.subr.mxu0 0.0
    %280 = vmatpush1.msra.mxu0 0.0
    %281 = vmatprep.mubr.f32.mxu0 0.0
    %282 = vmatmul.mubr.f32.gmra.mrb[0].mxu0 %v106
    %v283 = vpop.f32.mrb[0].mxu0
    %v284 = vadd.f32 0.0, %v283
    %v285 = vpop.f32.mrb[0].mxu0
    %286 = vmatprep.mubr.f32.mxu0 0.0
    %287 = vmatmul.mubr.f32.gmra.mrb[0].mxu0 %v107
    %v288 = vpop.f32.mrb[0].mxu0
    %v289 = vadd.f32 0.0, %v288
    %v290 = vpop.f32.mrb[0].mxu0
    %291 = vdwg.mxu0
    %v292 = vsub.f32 %v209, %v284
    %v293 = vsub.f32 %v214, %v289
    %v294 = vadd.f32 %v140, %v292
    %v295 = vadd.f32 %v141, %v293
    %296 = vst [vmem:[#allocation10] sm:$0xff] %v294
    %297 = vst [vmem:[#allocation10 + $0x8] sm:$0xff] %v295
    %v298 = vld [vmem:[#allocation11] sm:$0xff]
    %v299 = vld [vmem:[#allocation11 + $0x8] sm:$0xff]
    %300 = vmatprep.subr.mxu0 0.0
    %301 = vmatpush1.msra.mxu0 %v108
    %302 = vmatprep.subr.mxu0 0.0
    %303 = vmatpush1.msra.mxu0 %v109
    %304 = vmatprep.subr.mxu0 0.0
    %305 = vmatpush1.msra.mxu0 %v110
    %306 = vmatprep.subr.mxu0 0.0
    %307 = vmatpush1.msra.mxu0 %v111
    %308 = vmatprep.subr.mxu0 0.0
    %309 = vmatpush1.msra.mxu0 %v112
    %310 = vmatprep.subr.mxu0 0.0
    %311 = vmatpush1.msra.mxu0 %v113
    %312 = vmatprep.subr.mxu0 0.0
    %313 = vmatpush1.msra.mxu0 %v114
    %314 = vmatprep.subr.mxu0 0.0
    %315 = vmatpush1.msra.mxu0 %v115
    %316 = vmatprep.subr.mxu0 0.0
    %317 = vmatpush1.msra.mxu0 %v116
    %318 = vmatprep.subr.mxu0 0.0
    %319 = vmatpush1.msra.mxu0 %v117
    %320 = vmatprep.subr.mxu0 0.0
    %321 = vmatpush1.msra.mxu0 %v118
    %322 = vmatprep.subr.mxu0 0.0
    %323 = vmatpush1.msra.mxu0 %v119
    %324 = vmatprep.subr.mxu0 0.0
    %325 = vmatpush1.msra.mxu0 %v120
    %326 = vmatprep.subr.mxu0 0.0
    %327 = vmatpush1.msra.mxu0 %v121
    %328 = vmatprep.subr.mxu0 0.0
    %329 = vmatpush1.msra.mxu0 %v122
    %330 = vmatprep.subr.mxu0 0.0
    %331 = vmatpush1.msra.mxu0 %v123
    %332 = vmatprep.subr.mxu0 0.0
    %333 = vmatpush1.msra.mxu0 0.0
    %334 = vmatprep.subr.mxu0 0.0
    %335 = vmatpush1.msra.mxu0 0.0
    %336 = vmatprep.subr.mxu0 0.0
    %337 = vmatpush1.msra.mxu0 0.0
    %338 = vmatprep.subr.mxu0 0.0
    %339 = vmatpush1.msra.mxu0 0.0
    %340 = vmatprep.subr.mxu0 0.0
    %341 = vmatpush1.msra.mxu0 0.0
    %342 = vmatprep.subr.mxu0 0.0
    %343 = vmatpush1.msra.mxu0 0.0
    %344 = vmatprep.subr.mxu0 0.0
    %345 = vmatpush1.msra.mxu0 0.0
    %346 = vmatprep.subr.mxu0 0.0
    %347 = vmatpush1.msra.mxu0 0.0
    %348 = vmatprep.subr.mxu0 0.0
    %349 = vmatpush1.msra.mxu0 0.0
    %350 = vmatprep.subr.mxu0 0.0
    %351 = vmatpush1.msra.mxu0 0.0
    %352 = vmatprep.subr.mxu0 0.0
    %353 = vmatpush1.msra.mxu0 0.0
    %354 = vmatprep.subr.mxu0 0.0
    %355 = vmatpush1.msra.mxu0 0.0
    %356 = vmatprep.subr.mxu0 0.0
    %357 = vmatpush1.msra.mxu0 0.0
    %358 = vmatprep.subr.mxu0 0.0
    %359 = vmatpush1.msra.mxu0 0.0
    %360 = vmatprep.subr.mxu0 0.0
    %361 = vmatpush1.msra.mxu0 0.0
    %362 = vmatprep.subr.mxu0 0.0
    %363 = vmatpush1.msra.mxu0 0.0
    %364 = vmatprep.mubr.f32.mxu0 0.0
    %365 = vmatmul.mubr.f32.gmra.mrb[0].mxu0 %v106
    %v366 = vpop.f32.mrb[0].mxu0
    %v367 = vadd.f32 0.0, %v366
    %v368 = vpop.f32.mrb[0].mxu0
    %369 = vmatprep.mubr.f32.mxu0 0.0
    %370 = vmatmul.mubr.f32.gmra.mrb[0].mxu0 %v107
    %v371 = vpop.f32.mrb[0].mxu0
    %v372 = vadd.f32 0.0, %v371
    %v373 = vpop.f32.mrb[0].mxu0
    %374 = vdwg.mxu0
    %375 = vmatprep.subr.mxu0 0.0
    %376 = vmatpush1.msra.mxu0 %v124
    %377 = vmatprep.subr.mxu0 0.0
    %378 = vmatpush1.msra.mxu0 %v125
    %379 = vmatprep.subr.mxu0 0.0
    %380 = vmatpush1.msra.mxu0 %v126
    %381 = vmatprep.subr.mxu0 0.0
    %382 = vmatpush1.msra.mxu0 %v127
    %383 = vmatprep.subr.mxu0 0.0
    %384 = vmatpush1.msra.mxu0 %v128
    %385 = vmatprep.subr.mxu0 0.0
    %386 = vmatpush1.msra.mxu0 %v129
    %387 = vmatprep.subr.mxu0 0.0
    %388 = vmatpush1.msra.mxu0 %v130
    %389 = vmatprep.subr.mxu0 0.0
    %390 = vmatpush1.msra.mxu0 %v131
    %391 = vmatprep.subr.mxu0 0.0
    %392 = vmatpush1.msra.mxu0 %v132
    %393 = vmatprep.subr.mxu0 0.0
    %394 = vmatpush1.msra.mxu0 %v133
    %395 = vmatprep.subr.mxu0 0.0
    %396 = vmatpush1.msra.mxu0 %v134
    %397 = vmatprep.subr.mxu0 0.0
    %398 = vmatpush1.msra.mxu0 %v135
    %399 = vmatprep.subr.mxu0 0.0
    %400 = vmatpush1.msra.mxu0 %v136
    %401 = vmatprep.subr.mxu0 0.0
    %402 = vmatpush1.msra.mxu0 %v137
    %403 = vmatprep.subr.mxu0 0.0
    %404 = vmatpush1.msra.mxu0 %v138
    %405 = vmatprep.subr.mxu0 0.0
    %406 = vmatpush1.msra.mxu0 %v139
    %407 = vmatprep.subr.mxu0 0.0
    %408 = vmatpush1.msra.mxu0 0.0
    %409 = vmatprep.subr.mxu0 0.0
    %410 = vmatpush1.msra.mxu0 0.0
    %411 = vmatprep.subr.mxu0 0.0
    %412 = vmatpush1.msra.mxu0 0.0
    %413 = vmatprep.subr.mxu0 0.0
    %414 = vmatpush1.msra.mxu0 0.0
    %415 = vmatprep.subr.mxu0 0.0
    %416 = vmatpush1.msra.mxu0 0.0
    %417 = vmatprep.subr.mxu0 0.0
    %418 = vmatpush1.msra.mxu0 0.0
    %419 = vmatprep.subr.mxu0 0.0
    %420 = vmatpush1.msra.mxu0 0.0
    %421 = vmatprep.subr.mxu0 0.0
    %422 = vmatpush1.msra.mxu0 0.0
    %423 = vmatprep.subr.mxu0 0.0
    %424 = vmatpush1.msra.mxu0 0.0
    %425 = vmatprep.subr.mxu0 0.0
    %426 = vmatpush1.msra.mxu0 0.0
    %427 = vmatprep.subr.mxu0 0.0
    %428 = vmatpush1.msra.mxu0 0.0
    %429 = vmatprep.subr.mxu0 0.0
    %430 = vmatpush1.msra.mxu0 0.0
    %431 = vmatprep.subr.mxu0 0.0
    %432 = vmatpush1.msra.mxu0 0.0
    %433 = vmatprep.subr.mxu0 0.0
    %434 = vmatpush1.msra.mxu0 0.0
    %435 = vmatprep.subr.mxu0 0.0
    %436 = vmatpush1.msra.mxu0 0.0
    %437 = vmatprep.subr.mxu0 0.0
    %438 = vmatpush1.msra.mxu0 0.0
    %439 = vmatprep.mubr.f32.mxu0 0.0
    %440 = vmatmul.mubr.f32.gmra.mrb[0].mxu0 %v104
    %v441 = vpop.f32.mrb[0].mxu0
    %v442 = vadd.f32 %v367, %v441
    %v443 = vpop.f32.mrb[0].mxu0
    %444 = vmatprep.mubr.f32.mxu0 0.0
    %445 = vmatmul.mubr.f32.gmra.mrb[0].mxu0 %v105
    %v446 = vpop.f32.mrb[0].mxu0
    %v447 = vadd.f32 %v372, %v446
    %v448 = vpop.f32.mrb[0].mxu0
    %449 = vdwg.mxu0
    %v450 = vadd.f32 %v298, %v442
    %v451 = vadd.f32 %v299, %v447
    %452 = vst [vmem:[#allocation11] sm:$0xff] %v450
    %453 = vst [vmem:[#allocation11 + $0x8] sm:$0xff] %v451
    // Predicated region
    $region46: #{tpu_custom_call.1} parent=1 // pred_check
      _
    $region47: #{tpu_custom_call.1} parent=1 // pred_check_branch
      %455 = sbr.rel (0) target = $region49
    $region48: #{tpu_custom_call.1} parent=1 // pred_region
      %s457 = ssub.s32 256, 256
      %458 = vsyncadd [#allocation4], %s457
      %s459 = sshll.u32 [#allocation10], 4
      %s460 = int_to_ptr.vmem [resolvable:$true] %s459
      %465 = dma.vmem_to_hbm [thread:$0]  %s460, 256, %s6, [#allocation4], 128, 128, 8
    $region49: #{tpu_custom_call.1} parent=1 // pred_fallthru
      _
    // Predicated region
    $region50: #{tpu_custom_call.1} parent=1 // pred_check
      _
    $region51: #{tpu_custom_call.1} parent=1 // pred_check_branch
      %467 = sbr.rel (0) target = $region53
    $region52: #{tpu_custom_call.1} parent=1 // pred_region
      %s469 = ssub.s32 256, 256
      %470 = vsyncadd [#allocation12], %s469
      %s471 = sshll.u32 [#allocation11], 4
      %s472 = int_to_ptr.vmem [resolvable:$true] %s471
      %477 = dma.vmem_to_hbm [thread:$0]  %s472, 256, %s7, [#allocation12], 128, 128, 8
    $region53: #{tpu_custom_call.1} parent=1 // pred_fallthru
      _
    // Predicated region
    $region54: #{tpu_custom_call.1} parent=1 // pred_check
      _
    $region55: #{tpu_custom_call.1} parent=1 // pred_check_branch
      %479 = sbr.rel (0) target = $region57
    $region56: #{tpu_custom_call.1} parent=1 // pred_region
      %480 = dma.done [#allocation4], 256
    $region57: #{tpu_custom_call.1} parent=1 // pred_fallthru
      _
    // Predicated region
    $region58: #{tpu_custom_call.1} parent=1 // pred_check
      _
    $region59: #{tpu_custom_call.1} parent=1 // pred_check_branch
      %482 = sbr.rel (0) target = $region61
    $region60: #{tpu_custom_call.1} parent=1 // pred_region
      %483 = dma.done [#allocation12], 256
    $region61: #{tpu_custom_call.1} parent=1 // pred_fallthru
      _
    %484 = vsyncpa [#allocation3], 1
    %485 = vsyncpa [#allocation6], 1
    %486 = vsyncpa [#allocation9], 1
    %487 = vsyncpa [#allocation4], 1
    %488 = vsyncpa [#allocation12], 1

</llo_original>
